<compile_context>
chip_gen: v7x
topology: tpu7x:2x2x1
jax: 0.10.0
libtpu: 0.0.40
codegen_flags: <defaults>
</compile_context>

<pallas_src>
import functools

import jax
import jax.numpy as jnp
from jax.experimental import pallas as pl
from jax.experimental.pallas import tpu as pltpu

LANE = 128
SUBLANE = 8
ACC_ROWS = 4 * SUBLANE          # 32-row accumulator -> 4 sublane groups of ILP
DEFAULT_MAX_TILE_ROWS = 8192    # (8192, 128) f32 input block = 4 MiB


def _num_chunks_default():
    """2 chunks (leading 'parallel' axis) only on multi-TensorCore-per-device
    chips (v4 / v5p megacore, v7x); 1 chunk on single-TC chips (v5e / v6e)."""
    try:
        kind = jax.devices()[0].device_kind.lower()
    except Exception:
        return 1
    return 2 if any(tag in kind for tag in ("v4", "v5p", "v7")) else 1


def _dice_partial_kernel(o_ref, t_ref, acc_ref, *, tile_rows, acc_rows,
                         valid_rows_last):
    """Accumulate partial sums for one (tile_rows, LANE) tile of one chunk.

    o_ref, t_ref : (tile_rows, LANE) input tiles, native dtype.
    acc_ref      : (2, acc_rows, LANE) f32 output block, resident in VMEM
                   across the reduction grid axis:
                     acc_ref[0] += partial sums of sigmoid(o) * t
                     acc_ref[1] += partial sums of sigmoid(o) + t
    valid_rows_last : None if every tile is fully valid, else the number of
                   valid rows in the last tile of each chunk (static int).
    """
    step = pl.program_id(1)

    @pl.when(step == 0)
    def _():
        acc_ref[...] = jnp.zeros(acc_ref.shape, acc_ref.dtype)

    def fold_and_accumulate(valid_rows):
        groups = tile_rows // acc_rows

        def body(g, carry):
            p_acc, s_acc = carry
            r0 = pl.multiple_of(g * acc_rows, acc_rows)
            x = o_ref[pl.ds(r0, acc_rows), :].astype(jnp.float32)
            t = t_ref[pl.ds(r0, acc_rows), :].astype(jnp.float32)
            o = jax.nn.sigmoid(x)                       # EUP; kernel is mem-bound
            if valid_rows is not None:
                # Only reached on the single ragged last tile: mask rows past
                # the end of this chunk (OOB rows of the block are garbage).
                row = r0 + jax.lax.broadcasted_iota(
                    jnp.int32, (acc_rows, LANE), 0)
                keep = row < valid_rows
                o = jnp.where(keep, o, 0.0)
                t = jnp.where(keep, t, 0.0)
            # 2 * acc_rows/SUBLANE = 8 independent vreg add chains (ILP).
            return p_acc + o * t, s_acc + o + t

        zero = jnp.zeros((acc_rows, LANE), jnp.float32)
        prod, ssum = jax.lax.fori_loop(0, groups, body, (zero, zero))
        acc_ref[0] += prod
        acc_ref[1] += ssum

    if valid_rows_last is None:
        fold_and_accumulate(None)
    else:
        last = pl.num_programs(1) - 1

        @pl.when(step != last)
        def _():
            fold_and_accumulate(None)

        @pl.when(step == last)
        def _():
            fold_and_accumulate(valid_rows_last)


def dice_loss(outputs, targets, *, max_tile_rows=DEFAULT_MAX_TILE_ROWS,
              num_chunks=None):
    """Pallas implementation of DiceLoss.forward(outputs, targets) -> scalar f32."""
    assert outputs.shape == targets.shape
    n = outputs.size
    smooth = 1.0

    if num_chunks is None:
        num_chunks = _num_chunks_default()

    o_flat = outputs.reshape(-1)     # contiguous reshape: no HBM copy
    t_flat = targets.reshape(-1)

    # Zero-copy kernel path needs a lane-aligned, >= 8-row prefix per chunk.
    lane_align = num_chunks * LANE
    rows_per_chunk = n // lane_align
    if rows_per_chunk < SUBLANE:
        rows_per_chunk = 0
    n_main = rows_per_chunk * lane_align

    inter = jnp.zeros((), jnp.float32)
    denom = jnp.zeros((), jnp.float32)

    if n_main > 0:
        acc_rows = ACC_ROWS if rows_per_chunk >= ACC_ROWS else SUBLANE
        max_tr = max(acc_rows, (max_tile_rows // acc_rows) * acc_rows)
        tile_rows = min(max_tr, (rows_per_chunk // acc_rows) * acc_rows)
        steps = pl.cdiv(rows_per_chunk, tile_rows)
        last_rows = rows_per_chunk - (steps - 1) * tile_rows
        valid_rows_last = None if last_rows == tile_rows else last_rows

        if n_main == n:
            o_main, t_main = o_flat, t_flat            # no copy at all
        else:
            # TODO(synk): a truly zero-copy ragged path needs manual DMA from
            # the unaligned HBM array; XLA materializes this prefix slice.
            o_main, t_main = o_flat[:n_main], t_flat[:n_main]

        o3 = o_main.reshape(num_chunks, rows_per_chunk, LANE)
        t3 = t_main.reshape(num_chunks, rows_per_chunk, LANE)

        # VMEM: 2 inputs x 2 pipeline buffers x tile; fold temporaries are
        # vreg-scale, so a small margin suffices.
        bytes_per_row = LANE * (o3.dtype.itemsize + t3.dtype.itemsize)
        in_buf_bytes = 2 * tile_rows * bytes_per_row
        vmem_limit = int(min(64 * 2**20, max(32 * 2**20, in_buf_bytes + 8 * 2**20)))

        kernel = functools.partial(
            _dice_partial_kernel,
            tile_rows=tile_rows,
            acc_rows=acc_rows,
            valid_rows_last=valid_rows_last,
        )

        partials = pl.pallas_call(
            kernel,
            out_shape=jax.ShapeDtypeStruct((num_chunks, 2, acc_rows, LANE),
                                           jnp.float32),
            grid_spec=pltpu.PrefetchScalarGridSpec(
                num_scalar_prefetch=0,
                grid=(num_chunks, steps),
                in_specs=[
                    pl.BlockSpec((None, tile_rows, LANE), lambda c, i: (c, i, 0)),
                    pl.BlockSpec((None, tile_rows, LANE), lambda c, i: (c, i, 0)),
                ],
                out_specs=pl.BlockSpec((None, 2, acc_rows, LANE),
                                       lambda c, i: (c, 0, 0, 0)),
            ),
            compiler_params=pltpu.CompilerParams(
                dimension_semantics=("parallel", "arbitrary"),
                vmem_limit_bytes=vmem_limit,
            ),
        )(o3, t3)

        inter = inter + jnp.sum(partials[:, 0])
        denom = denom + jnp.sum(partials[:, 1])

    if n_main < n:
        # Sub-(num_chunks*128) ragged tail (or tiny inputs): plain JAX.
        o_tail = jax.nn.sigmoid(o_flat[n_main:].astype(jnp.float32))
        t_tail = t_flat[n_main:].astype(jnp.float32)
        inter = inter + jnp.sum(o_tail * t_tail)
        denom = denom + jnp.sum(o_tail) + jnp.sum(t_tail)

    dice = (2.0 * inter + smooth) / (denom + smooth)
    return 1.0 - dice


def dice_loss_ref(outputs, targets):
    smooth = 1.0
    o = jax.nn.sigmoid(outputs.astype(jnp.float32)).reshape(-1)
    t = targets.astype(jnp.float32).reshape(-1)
    inter = jnp.sum(o * t)
    dice = (2.0 * inter + smooth) / (jnp.sum(o) + jnp.sum(t) + smooth)
    return 1.0 - dice


if __name__ == "__main__":
    key = jax.random.PRNGKey(0)
    ks = jax.random.split(key, 8)

    def check(o, t, **kw):
        got = jax.block_until_ready(dice_loss(o, t, **kw))
        want = jax.block_until_ready(dice_loss_ref(o, t))
        assert jnp.allclose(got, want, atol=1e-5, rtol=1e-5), (got, want)

    # 1) Aligned NCHW input (batch=2, channels=4, 16x16): single full tile.
    o1 = jax.random.normal(ks[0], (2, 4, 16, 16), dtype=jnp.float32)
    t1 = (jax.random.uniform(ks[1], (2, 4, 16, 16)) > 0.5).astype(jnp.float32)
    check(o1, t1)

    # 2) 128-aligned but ragged row count: exercises the pl.when-gated
    #    last-tile row mask (zero-copy path, no padded HBM copy).
    o2 = jax.random.normal(ks[2], (2, 4, 32, 33), dtype=jnp.float32)
    t2 = (jax.random.uniform(ks[3], (2, 4, 32, 33)) > 0.5).astype(jnp.float32)
    check(o2, t2)

    # 3) Multi-step accumulation across the reduction grid axis + ragged last
    #    tile (small tile override to exercise the pipeline on a small input).
    o3 = jax.random.normal(ks[4], (1, 1, 72, 128), dtype=jnp.float32)
    t3 = (jax.random.uniform(ks[5], (1, 1, 72, 128)) > 0.5).astype(jnp.float32)
    check(o3, t3, max_tile_rows=32)

    # 4) Fully unaligned tiny input: plain-JAX tail path.
    o4 = jax.random.normal(ks[6], (3, 3, 7, 11), dtype=jnp.float32)
    t4 = (jax.random.uniform(ks[7], (3, 3, 7, 11)) > 0.5).astype(jnp.float32)
    check(o4, t4)

    # 5) bf16 logits: native-dtype DMA, f32 math in-kernel.
    check(o1.astype(jnp.bfloat16), t1)

    print("KERNEL_OK")
</pallas_src>

<mosaic_0001>
module attributes {stable_mosaic.version = 11 : i64} {
  func.func @_dice_partial_kernel(%arg0: i32, %arg1: i32, %arg2: memref<1x16x128xf32, #tpu.memory_space<vmem>>, %arg3: memref<1x16x128xf32, #tpu.memory_space<vmem>>, %arg4: memref<1x2x8x128xf32, #tpu.memory_space<vmem>>) attributes {dimension_semantics = [#tpu.dimension_semantics<parallel>, #tpu.dimension_semantics<arbitrary>], iteration_bounds = array<i64: 1, 1>, scalar_prefetch = 0 : i64, scratch_operands = 0 : i64, tpu.core_type = #tpu.core_type<tc>, window_params = [{transform_indices = @transform_0, window_bounds = array<i64: 1, 16, 128>}, {transform_indices = @transform_1, window_bounds = array<i64: 1, 16, 128>}, {transform_indices = @transform_2, window_bounds = array<i64: 1, 2, 8, 128>}]} {
    %c0_i32 = arith.constant 0 : i32
    %0 = arith.cmpi eq, %arg1, %c0_i32 : i32
    %1 = arith.extui %0 : i1 to i32
    %c0_i32_0 = arith.constant 0 : i32
    %2 = arith.cmpi ne, %1, %c0_i32_0 : i32
    scf.if %2 {
      %cst_17 = arith.constant 0.000000e+00 : f32
      %18 = vector.broadcast %cst_17 : f32 to vector<2x8x128xf32>
      %c0_18 = arith.constant 0 : index
      %c0_19 = arith.constant 0 : index
      %c0_20 = arith.constant 0 : index
      %c0_21 = arith.constant 0 : index
      %19 = vector.load %arg4[%c0_18, %c0_19, %c0_20, %c0_21] : memref<1x2x8x128xf32, #tpu.memory_space<vmem>>, vector<1x2x8x128xf32>
      %20 = vector.shape_cast %19 : vector<1x2x8x128xf32> to vector<2x8x128xf32>
      %21 = vector.shape_cast %18 : vector<2x8x128xf32> to vector<1x2x8x128xf32>
      tpu.vector_store %arg4[%c0_18, %c0_19, %c0_20, %c0_21], %21 {strides = array<i32>} : memref<1x2x8x128xf32, #tpu.memory_space<vmem>>, vector<1x2x8x128xf32>,
    } else {
    }
    %cst = arith.constant 0.000000e+00 : f32
    %3 = vector.broadcast %cst : f32 to vector<8x128xf32>
    %c0_i32_1 = arith.constant 0 : i32
    %c2_i32 = arith.constant 2 : i32
    %4 = arith.addi %c0_i32_1, %c2_i32 : i32
    %c1_i32 = arith.constant 1 : i32
    %5:2 = scf.for %arg5 = %c0_i32_1 to %4 step %c1_i32 iter_args(%arg6 = %3, %arg7 = %3) -> (vector<8x128xf32>, vector<8x128xf32>)  : i32 {
      %c8_i32 = arith.constant 8 : i32
      %18 = arith.muli %arg5, %c8_i32 : i32
      %19 = tpu.assume_multiple %18, 8 : i32
      %c0_17 = arith.constant 0 : index
      %20 = arith.index_cast %19 : i32 to index
      %c0_18 = arith.constant 0 : index
      %21 = vector.load %arg2[%c0_17, %20, %c0_18] : memref<1x16x128xf32, #tpu.memory_space<vmem>>, vector<1x8x128xf32>
      %22 = vector.shape_cast %21 : vector<1x8x128xf32> to vector<8x128xf32>
      %c0_19 = arith.constant 0 : index
      %23 = arith.index_cast %19 : i32 to index
      %c0_20 = arith.constant 0 : index
      %24 = vector.load %arg3[%c0_19, %23, %c0_20] : memref<1x16x128xf32, #tpu.memory_space<vmem>>, vector<1x8x128xf32>
      %25 = vector.shape_cast %24 : vector<1x8x128xf32> to vector<8x128xf32>
      %26 = arith.negf %22 : vector<8x128xf32>
      %27 = math.exp %26 : vector<8x128xf32>
      %cst_21 = arith.constant 1.000000e+00 : f32
      %28 = vector.broadcast %cst_21 : f32 to vector<8x128xf32>
      %29 = arith.addf %28, %27 : vector<8x128xf32>
      %30 = arith.divf %28, %29 : vector<8x128xf32>
      %31 = arith.mulf %30, %25 : vector<8x128xf32>
      %32 = arith.addf %arg6, %31 : vector<8x128xf32>
      %33 = arith.addf %arg7, %30 : vector<8x128xf32>
      %34 = arith.addf %33, %25 : vector<8x128xf32>
      scf.yield %32, %34 : vector<8x128xf32>, vector<8x128xf32>
    }
    %c2_i32_2 = arith.constant 2 : i32
    %c0 = arith.constant 0 : index
    %c0_3 = arith.constant 0 : index
    %c0_4 = arith.constant 0 : index
    %c0_5 = arith.constant 0 : index
    %6 = vector.load %arg4[%c0, %c0_3, %c0_4, %c0_5] : memref<1x2x8x128xf32, #tpu.memory_space<vmem>>, vector<1x1x8x128xf32>
    %7 = vector.shape_cast %6 : vector<1x1x8x128xf32> to vector<8x128xf32>
    %8 = arith.addf %7, %5#0 : vector<8x128xf32>
    %c0_6 = arith.constant 0 : index
    %c0_7 = arith.constant 0 : index
    %c0_8 = arith.constant 0 : index
    %c0_9 = arith.constant 0 : index
    %9 = vector.load %arg4[%c0_6, %c0_7, %c0_8, %c0_9] : memref<1x2x8x128xf32, #tpu.memory_space<vmem>>, vector<1x1x8x128xf32>
    %10 = vector.shape_cast %9 : vector<1x1x8x128xf32> to vector<8x128xf32>
    %11 = vector.shape_cast %8 : vector<8x128xf32> to vector<1x1x8x128xf32>
    tpu.vector_store %arg4[%c0_6, %c0_7, %c0_8, %c0_9], %11 {strides = array<i32>} : memref<1x2x8x128xf32, #tpu.memory_space<vmem>>, vector<1x1x8x128xf32>,
    %c0_10 = arith.constant 0 : index
    %c1 = arith.constant 1 : index
    %c0_11 = arith.constant 0 : index
    %c0_12 = arith.constant 0 : index
    %12 = vector.load %arg4[%c0_10, %c1, %c0_11, %c0_12] : memref<1x2x8x128xf32, #tpu.memory_space<vmem>>, vector<1x1x8x128xf32>
    %13 = vector.shape_cast %12 : vector<1x1x8x128xf32> to vector<8x128xf32>
    %14 = arith.addf %13, %5#1 : vector<8x128xf32>
    %c0_13 = arith.constant 0 : index
    %c1_14 = arith.constant 1 : index
    %c0_15 = arith.constant 0 : index
    %c0_16 = arith.constant 0 : index
    %15 = vector.load %arg4[%c0_13, %c1_14, %c0_15, %c0_16] : memref<1x2x8x128xf32, #tpu.memory_space<vmem>>, vector<1x1x8x128xf32>
    %16 = vector.shape_cast %15 : vector<1x1x8x128xf32> to vector<8x128xf32>
    %17 = vector.shape_cast %14 : vector<8x128xf32> to vector<1x1x8x128xf32>
    tpu.vector_store %arg4[%c0_13, %c1_14, %c0_15, %c0_16], %17 {strides = array<i32>} : memref<1x2x8x128xf32, #tpu.memory_space<vmem>>, vector<1x1x8x128xf32>,
    return
  }
  func.func @transform_0(%arg0: i32, %arg1: i32) -> (i32, i32, i32) {
    %c0_i32 = arith.constant 0 : i32
    %c0_i32_0 = arith.constant 0 : i32
    return %arg0, %arg1, %c0_i32 : i32, i32, i32
  }
  func.func @transform_1(%arg0: i32, %arg1: i32) -> (i32, i32, i32) {
    %c0_i32 = arith.constant 0 : i32
    %c0_i32_0 = arith.constant 0 : i32
    return %arg0, %arg1, %c0_i32 : i32, i32, i32
  }
  func.func @transform_2(%arg0: i32, %arg1: i32) -> (i32, i32, i32, i32) {
    %c0_i32 = arith.constant 0 : i32
    %c0_i32_0 = arith.constant 0 : i32
    %c0_i32_1 = arith.constant 0 : i32
    %c0_i32_2 = arith.constant 0 : i32
    return %arg0, %c0_i32, %c0_i32_0, %c0_i32_1 : i32, i32, i32, i32
  }
}

</mosaic_0001>

<llo_original>
// kernel: tpu_custom_call.1
$region0: #{tpu_custom_call.1}
  #allocation0 [shape = 'u32[]', space=smem, size = 0x4, offset = 0x4, fixed_abs, tag = 'smem constant byte address 0x4 - core index']
  #allocation1 [shape = 'u32[144,128]{1,0:T(1,128)}', space=vmem, size = 0x12000, scoped, tag = 'internal scratch']
  %s0 = inlined_call_operand.hbm [shape: f32[1,16,128], index: 0, kind: input, shape index: {}]
  %s1 = inlined_call_operand.hbm [shape: f32[1,16,128], index: 1, kind: input, shape index: {}]
  %s2 = inlined_call_operand.hbm [shape: f32[1,2,8,128], index: 2, kind: output, shape index: {}]
  %s3 = sld [smem:[#allocation0]]
  $region37: #{tpu_custom_call.1} parent=0
    _
  %s5 = ssub.s32 1, %s3
  %s6 = scalar_select 0, %s5, %s3
  $region1: #{tpu_custom_call.1} parent=0
    #allocation2 [shape = 'u8[8192]{0}', space=vmem, size = 0x2000, scoped, tag = 'input window, operand 0, single buffered']
    #allocation3 [shape = 's32[1]{0}', space=sflag, size = 0x4, scoped, tag = 'scoped memory for tpu_custom_call.1']
    #allocation4 [shape = 's32[1]{0}', space=sflag, size = 0x4, scoped, tag = 'scoped memory for tpu_custom_call.1']
    #allocation5 [shape = 'u8[8192]{0}', space=vmem, size = 0x2000, scoped, tag = 'input window, operand 1, single buffered']
    #allocation6 [shape = 's32[1]{0}', space=sflag, size = 0x4, scoped, tag = 'scoped memory for tpu_custom_call.1']
    #allocation7 [shape = 'u8[8192]{0}', space=vmem, size = 0x2000, scoped, tag = 'output window, operand 0, single buffered']
    %7 = vsyncpa [#allocation3], 0
    %8 = vsyncpa [#allocation6], 0
    %9 = vsyncpa [#allocation4], 0
    // Predicated region
    $region2: #{tpu_custom_call.1} parent=1 // pred_check
      _
    $region3: #{tpu_custom_call.1} parent=1 // pred_check_branch
      %11 = sbr.rel (0) target = $region5
    $region4: #{tpu_custom_call.1} parent=1 // pred_region
      %s13 = ssub.s32 256, 256
      %14 = vsyncadd [#allocation3], %s13
      %s15 = sshll.u32 [#allocation2], 4
      %s16 = int_to_ptr.vmem [resolvable:$true] %s15
      %21 = dma.hbm_to_vmem [thread:$0]  %s0, 256, %s16, [#allocation3], 128, 128, 8
    $region5: #{tpu_custom_call.1} parent=1 // pred_fallthru
      _
    // Predicated region
    $region6: #{tpu_custom_call.1} parent=1 // pred_check
      _
    $region7: #{tpu_custom_call.1} parent=1 // pred_check_branch
      %23 = sbr.rel (0) target = $region9
    $region8: #{tpu_custom_call.1} parent=1 // pred_region
      %s25 = ssub.s32 256, 256
      %26 = vsyncadd [#allocation6], %s25
      %s27 = sshll.u32 [#allocation5], 4
      %s28 = int_to_ptr.vmem [resolvable:$true] %s27
      %33 = dma.hbm_to_vmem [thread:$0]  %s1, 256, %s28, [#allocation6], 128, 128, 8
    $region9: #{tpu_custom_call.1} parent=1 // pred_fallthru
      _
    // Predicated region
    $region10: #{tpu_custom_call.1} parent=1 // pred_check
      _
    $region11: #{tpu_custom_call.1} parent=1 // pred_check_branch
      %35 = sbr.rel (0) target = $region13
    $region12: #{tpu_custom_call.1} parent=1 // pred_region
      %36 = dma.done [#allocation3], 256
    $region13: #{tpu_custom_call.1} parent=1 // pred_fallthru
      _
    // Predicated region
    $region14: #{tpu_custom_call.1} parent=1 // pred_check
      _
    $region15: #{tpu_custom_call.1} parent=1 // pred_check_branch
      %38 = sbr.rel (0) target = $region17
    $region16: #{tpu_custom_call.1} parent=1 // pred_region
      %39 = dma.done [#allocation6], 256
    $region17: #{tpu_custom_call.1} parent=1 // pred_fallthru
      _
    %p40 = scmp.eq.s32.totalorder 0, 0
    // Predicated region
    $region18: #{tpu_custom_call.1} parent=1 // pred_check
      %p41 = pneg %p40
    $region19: #{tpu_custom_call.1} parent=1 // pred_check_branch
      %43 = sbr.rel (%p41) target = $region21
    $region20: #{tpu_custom_call.1} parent=1 // pred_region
      %44 = vst [vmem:[#allocation7] sm:$0xff] 0.0
      %45 = vst [vmem:[#allocation7 + $0x8] sm:$0xff] 0.0
    $region21: #{tpu_custom_call.1} parent=1 // pred_fallthru
      _
    loop: start=0, step=1, limit=2
    $region22: #{tpu_custom_call.1} parent=1 // loop_pre_header
      _
    $region23: #{tpu_custom_call.1} parent=1 // loop_header
      %s47 = sphi 0, %s51
      %p48 = scmp.ge.s32.totalorder %s47, 2
      %v52 = vphi 0.0, %v66
      %v53 = vphi 0.0, %v68
    $region24: #{tpu_custom_call.1} parent=1 // loop_header_branch
      %50 = sbr.rel (%p48) target = $region28
    $region25: #{tpu_custom_call.1} parent=1 // loop_body
      %s54 = smul.u32 %s47, 8
      %s55 = scalar_lea.vmem [#allocation2], %s54
      %v56 = vld [vmem:[%s55] sm:$0xff]
      %s57 = scalar_lea.vmem [#allocation5], %s54
      %v58 = vld [vmem:[%s57] sm:$0xff]
      %v59 = vxor.u32 %v56, 2147483648
      %v60 = vmul.f32 %v59, 1.442695
      %v61 = vpow.pop %v60
      %v62 = vadd.f32 %v61, 1.0
      %v63 = vrcp.pop %v62
      %v64 = vmul.f32 1.0, %v63
      %v65 = vmul.f32 %v64, %v58
      %v66 = vadd.f32 %v52, %v65
      %v67 = vadd.f32 %v53, %v64
      %v68 = vadd.f32 %v67, %v58
    $region26: #{tpu_custom_call.1} parent=1 // loop_footer
      %s51 = sadd.s32 1, %s47
    $region27: #{tpu_custom_call.1} parent=1 // loop_footer_branch
      %46 = sbr.rel target = $region23
    $region28: #{tpu_custom_call.1} parent=1 // loop_exit
      _
    %v69 = vld [vmem:[#allocation7] sm:$0xff]
    %v70 = vadd.f32 %v69, %v52
    %71 = vst [vmem:[#allocation7] sm:$0xff] %v70
    %s72 = scalar_lea.vmem [#allocation7], 8
    %v73 = vld [vmem:[%s72] sm:$0xff]
    %v74 = vadd.f32 %v73, %v53
    %75 = vst [vmem:[%s72] sm:$0xff] %v74
    // Predicated region
    $region29: #{tpu_custom_call.1} parent=1 // pred_check
      _
    $region30: #{tpu_custom_call.1} parent=1 // pred_check_branch
      %77 = sbr.rel (0) target = $region32
    $region31: #{tpu_custom_call.1} parent=1 // pred_region
      %s79 = ssub.s32 256, 256
      %80 = vsyncadd [#allocation4], %s79
      %s81 = sshll.u32 [#allocation7], 4
      %s82 = int_to_ptr.vmem [resolvable:$true] %s81
      %87 = dma.vmem_to_hbm [thread:$0]  %s82, 256, %s2, [#allocation4], 128, 128, 8
    $region32: #{tpu_custom_call.1} parent=1 // pred_fallthru
      _
    // Predicated region
    $region33: #{tpu_custom_call.1} parent=1 // pred_check
      _
    $region34: #{tpu_custom_call.1} parent=1 // pred_check_branch
      %89 = sbr.rel (0) target = $region36
    $region35: #{tpu_custom_call.1} parent=1 // pred_region
      %90 = dma.done [#allocation4], 256
    $region36: #{tpu_custom_call.1} parent=1 // pred_fallthru
      _
    %91 = vsyncpa [#allocation3], 1
    %92 = vsyncpa [#allocation6], 1
    %93 = vsyncpa [#allocation4], 1

</llo_original>
